<compile_context>
chip_gen: v7x
topology: tpu7x:2x2x1
jax: 0.10.0
libtpu: 0.0.40
codegen_flags: <defaults>
</compile_context>

<pallas_src>
import functools

import jax
import jax.numpy as jnp
from jax.experimental import pallas as pl
from jax.experimental.pallas import tpu as pltpu


def _round_up(x, m):
    return (x + m - 1) // m * m


# ----------------------------------------------------------------------------
# Pallas kernel: vocab-tiled online logsumexp over logits = W_aug^T @ emb_aug
# refs: W_aug (D+1, TILE_V) f32 | emb_aug^T (D+1, TILE_M) f32
# out:  (1, TILE_M) f32 logsumexp per token (lane-dense)
# ----------------------------------------------------------------------------
def _lse_kernel(w_ref, emb_ref, out_ref, m_sc, l_sc):
    v = pl.program_id(1)

    @pl.when(v == 0)
    def _init():
        m_sc[...] = jnp.full_like(m_sc, -jnp.inf)
        l_sc[...] = jnp.zeros_like(l_sc)

    # (D+1, TILE_V) x (D+1, TILE_M), contracting dim 0 of both (trans-LHS,
    # MXU-native) -> (TILE_V, TILE_M): vocab on sublanes, tokens on lanes.
    # Bias + vocab-padding sentinel live in the extra K row, so no elementwise
    # add and no in-kernel masking are needed.
    logits = jax.lax.dot_general(
        w_ref[...], emb_ref[...],
        dimension_numbers=(((0,), (0,)), ((), ())),
        preferred_element_type=jnp.float32)

    # online logsumexp over the vocab (sublane) axis
    m_cur = jnp.max(logits, axis=0, keepdims=True)            # (1, TILE_M)
    m_new = jnp.maximum(m_sc[...], m_cur)
    l_sc[...] = (l_sc[...] * jnp.exp(m_sc[...] - m_new)
                 + jnp.sum(jnp.exp(logits - m_new), axis=0, keepdims=True))
    m_sc[...] = m_new

    @pl.when(v == pl.num_programs(1) - 1)
    def _finalize():
        out_ref[...] = m_sc[...] + jnp.log(l_sc[...])


def token_logprobs(params, seq, *, tile_m=512, tile_v=256):
    """Pallas log_prob_from_model_and_seq for the synthetic LM.

    Returns log_softmax(embed(seq) @ W + b, -1)[b, n, seq[b, n]] with shape (B, N).
    """
    embed_tbl, w, b = params
    B, N = seq.shape
    D, V = w.shape
    K = D + 1
    M = B * N
    seq_flat = seq.reshape(M).astype(jnp.int32)

    # --- tiling (multiples of 128; don't over-pad small problems) ------------
    M_128 = _round_up(max(M, 128), 128)
    tile_m = max(128, min(tile_m, M_128))
    # v7x megacore: keep >= 2 tiles on the "parallel" M axis when possible.
    if M_128 // tile_m < 2 and M_128 >= 256:
        tile_m = _round_up(M_128 // 2, 128)
    M_pad = _round_up(M_128, tile_m)

    V_128 = _round_up(V, 128)
    tile_v = max(128, min(tile_v, V_128))
    V_pad = _round_up(V_128, tile_v)

    num_m = M_pad // tile_m
    num_v = V_pad // tile_v

    # --- operand prep (XLA glue) ---------------------------------------------
    emb = jnp.take(embed_tbl, seq_flat, axis=0).astype(jnp.float32)   # (M, D)

    # TODO(synk): the embedding row-gather + transpose could be fused into the
    # kernel (scalar-prefetched ids + pl.Element row BlockSpec); kept as glue.
    emb_aug = jnp.zeros((K, M_pad), jnp.float32)
    emb_aug = emb_aug.at[:D, :M].set(emb.T)
    emb_aug = emb_aug.at[D, :].set(1.0)                               # ones row

    # TODO(synk): on real HW, W could be streamed in bf16 (v5e/v6e) or fp8
    # (v7x, e4m3 + per-channel scale) to halve the dominant HBM stream; kept
    # fp32 here for interpreter/runtime compatibility and exact-fp32 accuracy.
    bias = b.reshape(V).astype(jnp.float32)
    bias_row = jnp.full((V_pad,), -1e30, jnp.float32).at[:V].set(bias)
    w_aug = jnp.zeros((K, V_pad), jnp.float32)
    w_aug = w_aug.at[:D, :V].set(w.astype(jnp.float32))               # natural (D, V)
    w_aug = w_aug.at[D, :].set(bias_row)                              # bias / -1e30 pad

    cost = pl.CostEstimate(
        flops=2 * M_pad * V_pad * K,
        transcendentals=M_pad * V_pad,
        bytes_accessed=(w_aug.size * 4 * num_m + emb_aug.size * 4 + M_pad * 4),
    )

    lse = pl.pallas_call(
        _lse_kernel,
        out_shape=jax.ShapeDtypeStruct((1, M_pad), jnp.float32),
        grid_spec=pltpu.PrefetchScalarGridSpec(
            num_scalar_prefetch=0,
            grid=(num_m, num_v),                      # vocab (reduction) axis last
            in_specs=[
                pl.BlockSpec((K, tile_v), lambda i, v: (0, v)),   # W_aug tile
                pl.BlockSpec((K, tile_m), lambda i, v: (0, i)),   # emb_aug^T tile
            ],
            out_specs=pl.BlockSpec((1, tile_m), lambda i, v: (0, i)),
            scratch_shapes=[pltpu.VMEM((1, tile_m), jnp.float32)] * 2,  # m, l
        ),
        compiler_params=pltpu.CompilerParams(
            dimension_semantics=("parallel", "arbitrary")),
        cost_estimate=cost,
    )(w_aug, emb_aug)

    # Target raw logit: O(M*D) glue, hoisted out of the vocab loop per review.
    # (Token ids are assumed < V; out-of-range ids would be silently clamped.)
    w_sel = jnp.take(w.astype(jnp.float32), seq_flat, axis=1)         # (D, M)
    sel = jnp.sum(emb * w_sel.T, axis=-1) + jnp.take(bias, seq_flat)  # (M,)

    return (sel - lse[0, :M]).reshape(B, N)


def token_logprobs_jax_ref(params, seq):
    """Pure-JAX fp32 reference for the kernel path (correctness check)."""
    embed_tbl, w, b = params
    emb = jnp.take(embed_tbl, seq, axis=0).astype(jnp.float32)
    logits = emb @ w + b[0]
    lp = jax.nn.log_softmax(logits, axis=-1)
    return jnp.take_along_axis(lp, seq[..., None], axis=-1)[..., 0]


# ----------------------------------------------------------------------------
# aSFT.forward semantics
# ----------------------------------------------------------------------------
def _masked_mean(x, mask):
    m = mask.astype(x.dtype)
    num = jnp.sum(x * m, axis=-1)
    den = jnp.clip(jnp.sum(m, axis=-1), 1e-5, None)
    return num / den


def asft_forward(policy_params, ref_params, generated_seq, real_seq, prompt_len,
                 pad_id=0, lam=0.1, logprob_fn=token_logprobs):
    n = real_seq.shape[-1]
    pos = jnp.arange(n)
    real_prompt_mask = pos < prompt_len[:, None]                      # (B, N)
    generated_prompt_mask = pos < prompt_len[:, None]
    real_seq_prompt = jnp.where(real_prompt_mask, real_seq, pad_id)

    # pad_id handling (mirrors the in-place masked_fill_ in the torch module)
    generated_seq_mask = generated_seq != pad_id
    generated_seq = jnp.where(generated_seq_mask, generated_seq, 0)
    real_seq_mask = real_seq != pad_id
    real_seq = jnp.where(real_seq_mask, real_seq, 0)
    real_seq_prompt_mask = real_seq_prompt != pad_id
    real_seq_prompt = jnp.where(real_seq_prompt_mask, real_seq_prompt, 0)

    # reference model (EMA of policy, no grad) + policy model log-probs
    ref_generated_logprob = logprob_fn(ref_params, generated_seq)
    ref_real_logprob = logprob_fn(ref_params, real_seq_prompt)
    policy_generated_logprob = logprob_fn(policy_params, generated_seq)
    policy_real_logprob = logprob_fn(policy_params, real_seq_prompt)

    gen_mask = generated_seq_mask & jnp.logical_not(generated_prompt_mask)
    real_mask = real_seq_mask & jnp.logical_not(real_prompt_mask)

    policy_generated_logprob = _masked_mean(policy_generated_logprob, gen_mask)
    ref_generated_logprob = _masked_mean(ref_generated_logprob, gen_mask)
    policy_real_logprob = _masked_mean(policy_real_logprob, real_mask)
    ref_real_logprob = _masked_mean(ref_real_logprob, real_mask)

    # TODO(synk): as in the torch module, generated / ref log-probs are computed
    # but never enter the returned loss; under jit they are DCE'd.
    losses = -lam * policy_real_logprob
    return jnp.mean(losses)


# ----------------------------------------------------------------------------
# main
# ----------------------------------------------------------------------------
if __name__ == "__main__":
    B, N, D, V = 2, 8, 32, 128
    PAD_ID = 0
    LAM = 0.1

    key = jax.random.PRNGKey(0)
    k_emb, k_w, k_b, k_gen, k_real = jax.random.split(key, 5)

    # synthetic policy LM parameters (deterministic)
    embed_tbl = jax.random.normal(k_emb, (V, D), jnp.float32) * 0.1
    w = jax.random.normal(k_w, (D, V), jnp.float32) * 0.1
    b = jax.random.normal(k_b, (1, V), jnp.float32) * 0.01
    policy_params = (embed_tbl, w, b)
    # ref model is an EMA copy of the policy at init
    ref_params = (embed_tbl, w, b)

    generated_seq = jax.random.randint(k_gen, (B, N), 1, V, jnp.int32)
    real_seq = jax.random.randint(k_real, (B, N), 1, V, jnp.int32)
    prompt_len = jnp.array([3, 5], jnp.int32)

    # per-token log-prob correctness (fp32 kernel vs fp32 reference)
    lp = jax.block_until_ready(jax.jit(token_logprobs)(policy_params, real_seq))
    lp_ref = jax.block_until_ready(
        jax.jit(token_logprobs_jax_ref)(policy_params, real_seq))
    assert jnp.allclose(lp, lp_ref, rtol=1e-3, atol=1e-3), (lp, lp_ref)

    fwd = jax.jit(functools.partial(asft_forward, pad_id=PAD_ID, lam=LAM,
                                    logprob_fn=token_logprobs))
    fwd_ref = jax.jit(functools.partial(asft_forward, pad_id=PAD_ID, lam=LAM,
                                        logprob_fn=token_logprobs_jax_ref))

    loss = jax.block_until_ready(
        fwd(policy_params, ref_params, generated_seq, real_seq, prompt_len))
    loss_ref = jax.block_until_ready(
        fwd_ref(policy_params, ref_params, generated_seq, real_seq, prompt_len))
    assert jnp.allclose(loss, loss_ref, rtol=1e-3, atol=1e-3), (loss, loss_ref)

    print("KERNEL_OK")
</pallas_src>

<mosaic_0001>
module attributes {stable_mosaic.version = 11 : i64} {
  func.func @_lse_kernel(%arg0: i32, %arg1: i32, %arg2: memref<33x128xf32, #tpu.memory_space<vmem>>, %arg3: memref<33x128xf32, #tpu.memory_space<vmem>>, %arg4: memref<1x128xf32, #tpu.memory_space<vmem>>, %arg5: memref<1x128xf32, #tpu.memory_space<vmem>>, %arg6: memref<1x128xf32, #tpu.memory_space<vmem>>) attributes {dimension_semantics = [#tpu.dimension_semantics<parallel>, #tpu.dimension_semantics<arbitrary>], iteration_bounds = array<i64: 1, 1>, scalar_prefetch = 0 : i64, scratch_operands = 2 : i64, tpu.core_type = #tpu.core_type<tc>, window_params = [{transform_indices = @transform_0, window_bounds = array<i64: 33, 128>}, {transform_indices = @transform_1, window_bounds = array<i64: 33, 128>}, {transform_indices = @transform_2, window_bounds = array<i64: 1, 128>}]} {
    %c0_i32 = arith.constant 0 : i32
    %0 = arith.cmpi eq, %arg1, %c0_i32 : i32
    %1 = arith.extui %0 : i1 to i32
    %c0_i32_0 = arith.constant 0 : i32
    %2 = arith.cmpi ne, %1, %c0_i32_0 : i32
    scf.if %2 {
      %cst_18 = arith.constant 0xFF800000 : f32
      %26 = vector.broadcast %cst_18 : f32 to vector<1x128xf32>
      %c0_19 = arith.constant 0 : index
      %c0_20 = arith.constant 0 : index
      %27 = vector.load %arg5[%c0_19, %c0_20] : memref<1x128xf32, #tpu.memory_space<vmem>>, vector<1x128xf32>
      tpu.vector_store %arg5[%c0_19, %c0_20], %26 {strides = array<i32>} : memref<1x128xf32, #tpu.memory_space<vmem>>, vector<1x128xf32>,
      %cst_21 = arith.constant 0.000000e+00 : f32
      %28 = vector.broadcast %cst_21 : f32 to vector<1x128xf32>
      %c0_22 = arith.constant 0 : index
      %c0_23 = arith.constant 0 : index
      %29 = vector.load %arg6[%c0_22, %c0_23] : memref<1x128xf32, #tpu.memory_space<vmem>>, vector<1x128xf32>
      tpu.vector_store %arg6[%c0_22, %c0_23], %28 {strides = array<i32>} : memref<1x128xf32, #tpu.memory_space<vmem>>, vector<1x128xf32>,
    } else {
    }
    %c0 = arith.constant 0 : index
    %c0_1 = arith.constant 0 : index
    %3 = vector.load %arg2[%c0, %c0_1] : memref<33x128xf32, #tpu.memory_space<vmem>>, vector<33x128xf32>
    %c0_2 = arith.constant 0 : index
    %c0_3 = arith.constant 0 : index
    %4 = vector.load %arg3[%c0_2, %c0_3] : memref<33x128xf32, #tpu.memory_space<vmem>>, vector<33x128xf32>
    %cst = arith.constant dense<0.000000e+00> : vector<128x128xf32>
    %5 = tpu.matmul %3, %4, %cst {dimension_numbers = #tpu.dot_dimension_numbers<[0], [0], [1], [1], [0, 1, 1, 1], [], []>} : vector<33x128xf32>, vector<33x128xf32>, vector<128x128xf32> -> vector<128x128xf32>
    %cst_4 = arith.constant dense<0xFF800000> : vector<128xf32>
    %6 = vector.multi_reduction <maximumf>, %5, %cst_4 [0] : vector<128x128xf32> to vector<128xf32>
    %7 = vector.shape_cast %6 : vector<128xf32> to vector<1x128xf32>
    %c0_5 = arith.constant 0 : index
    %c0_6 = arith.constant 0 : index
    %8 = vector.load %arg5[%c0_5, %c0_6] : memref<1x128xf32, #tpu.memory_space<vmem>>, vector<1x128xf32>
    %9 = arith.maximumf %8, %7 : vector<1x128xf32>
    %c0_7 = arith.constant 0 : index
    %c0_8 = arith.constant 0 : index
    %10 = vector.load %arg6[%c0_7, %c0_8] : memref<1x128xf32, #tpu.memory_space<vmem>>, vector<1x128xf32>
    %c0_9 = arith.constant 0 : index
    %c0_10 = arith.constant 0 : index
    %11 = vector.load %arg5[%c0_9, %c0_10] : memref<1x128xf32, #tpu.memory_space<vmem>>, vector<1x128xf32>
    %12 = arith.subf %11, %9 : vector<1x128xf32>
    %13 = math.exp %12 : vector<1x128xf32>
    %14 = arith.mulf %10, %13 : vector<1x128xf32>
    %15 = vector.broadcast %9 : vector<1x128xf32> to vector<128x128xf32>
    %16 = arith.subf %5, %15 : vector<128x128xf32>
    %17 = math.exp %16 : vector<128x128xf32>
    %cst_11 = arith.constant dense<0.000000e+00> : vector<128xf32>
    %18 = vector.multi_reduction <add>, %17, %cst_11 [0] : vector<128x128xf32> to vector<128xf32>
    %19 = vector.shape_cast %18 : vector<128xf32> to vector<1x128xf32>
    %20 = arith.addf %14, %19 : vector<1x128xf32>
    %c0_12 = arith.constant 0 : index
    %c0_13 = arith.constant 0 : index
    %21 = vector.load %arg6[%c0_12, %c0_13] : memref<1x128xf32, #tpu.memory_space<vmem>>, vector<1x128xf32>
    tpu.vector_store %arg6[%c0_12, %c0_13], %20 {strides = array<i32>} : memref<1x128xf32, #tpu.memory_space<vmem>>, vector<1x128xf32>,
    %c0_14 = arith.constant 0 : index
    %c0_15 = arith.constant 0 : index
    %22 = vector.load %arg5[%c0_14, %c0_15] : memref<1x128xf32, #tpu.memory_space<vmem>>, vector<1x128xf32>
    tpu.vector_store %arg5[%c0_14, %c0_15], %9 {strides = array<i32>} : memref<1x128xf32, #tpu.memory_space<vmem>>, vector<1x128xf32>,
    %c0_i32_16 = arith.constant 0 : i32
    %23 = arith.cmpi eq, %arg1, %c0_i32_16 : i32
    %24 = arith.extui %23 : i1 to i32
    %c0_i32_17 = arith.constant 0 : i32
    %25 = arith.cmpi ne, %24, %c0_i32_17 : i32
    scf.if %25 {
      %c0_18 = arith.constant 0 : index
      %c0_19 = arith.constant 0 : index
      %26 = vector.load %arg5[%c0_18, %c0_19] : memref<1x128xf32, #tpu.memory_space<vmem>>, vector<1x128xf32>
      %c0_20 = arith.constant 0 : index
      %c0_21 = arith.constant 0 : index
      %27 = vector.load %arg6[%c0_20, %c0_21] : memref<1x128xf32, #tpu.memory_space<vmem>>, vector<1x128xf32>
      %28 = math.log %27 : vector<1x128xf32>
      %29 = arith.addf %26, %28 : vector<1x128xf32>
      %c0_22 = arith.constant 0 : index
      %c0_23 = arith.constant 0 : index
      %30 = vector.load %arg4[%c0_22, %c0_23] : memref<1x128xf32, #tpu.memory_space<vmem>>, vector<1x128xf32>
      tpu.vector_store %arg4[%c0_22, %c0_23], %29 {strides = array<i32>} : memref<1x128xf32, #tpu.memory_space<vmem>>, vector<1x128xf32>,
    } else {
    }
    return
  }
  func.func @transform_0(%arg0: i32, %arg1: i32) -> (i32, i32) {
    %c0_i32 = arith.constant 0 : i32
    %c0_i32_0 = arith.constant 0 : i32
    return %c0_i32, %arg1 : i32, i32
  }
  func.func @transform_1(%arg0: i32, %arg1: i32) -> (i32, i32) {
    %c0_i32 = arith.constant 0 : i32
    %c0_i32_0 = arith.constant 0 : i32
    return %c0_i32, %arg0 : i32, i32
  }
  func.func @transform_2(%arg0: i32, %arg1: i32) -> (i32, i32) {
    %c0_i32 = arith.constant 0 : i32
    %c0_i32_0 = arith.constant 0 : i32
    return %c0_i32, %arg0 : i32, i32
  }
}

</mosaic_0001>

<llo_original>
// kernel: token_logprobs.1
$region0: #{token_logprobs.1}
  #allocation0 [shape = 'u32[]', space=smem, size = 0x4, offset = 0x4, fixed_abs, tag = 'smem constant byte address 0x4 - core index']
  #allocation1 [shape = 'u32[144,128]{1,0:T(1,128)}', space=vmem, size = 0x12000, scoped, tag = 'internal scratch']
  #allocation2 [shape = 'f32[1,128]{1,0:T(1,128)}', space=vmem, size = 0x200, scoped, tag = 'scratch operand']
  #allocation3 [shape = 'f32[1,128]{1,0:T(1,128)}', space=vmem, size = 0x200, scoped, tag = 'scratch operand']
  %s0 = inlined_call_operand.vmem [shape: f32[33,128], index: 0, kind: input, shape index: {}]
  %s1 = inlined_call_operand.vmem [shape: f32[33,128], index: 1, kind: input, shape index: {}]
  %s2 = inlined_call_operand.vmem [shape: f32[1,128], index: 2, kind: output, shape index: {}]
  %s3 = sld [smem:[#allocation0]]
  $region26: #{token_logprobs.1} parent=0
    _
  %s5 = ssub.s32 1, %s3
  %s6 = scalar_select 0, %s5, %s3
  // Predicated region
  $region2: #{token_logprobs.1} parent=0 // pred_check
    _
  $region3: #{token_logprobs.1} parent=0 // pred_check_branch
    %8 = sbr.rel (0) target = $region5
  $region4: #{token_logprobs.1} parent=0 // pred_region
    _
  $region5: #{token_logprobs.1} parent=0 // pred_fallthru
    _
  // Predicated region
  $region6: #{token_logprobs.1} parent=0 // pred_check
    _
  $region7: #{token_logprobs.1} parent=0 // pred_check_branch
    %10 = sbr.rel (0) target = $region9
  $region8: #{token_logprobs.1} parent=0 // pred_region
    _
  $region9: #{token_logprobs.1} parent=0 // pred_fallthru
    _
  %p11 = scmp.eq.s32.totalorder 0, 0
  // Predicated region
  $region10: #{token_logprobs.1} parent=0 // pred_check
    %p12 = pneg %p11
  $region11: #{token_logprobs.1} parent=0 // pred_check_branch
    %14 = sbr.rel (%p12) target = $region13
  $region12: #{token_logprobs.1} parent=0 // pred_region
    %15 = vst [vmem:[#allocation2] sm:$0x1] -inf
    %16 = vst [vmem:[#allocation3] sm:$0x1] 0.0
  $region13: #{token_logprobs.1} parent=0 // pred_fallthru
    _
  %v17 = vld [vmem:[%s0] sm:$0xff]
  %v18 = vld [vmem:[%s0 + $0x8] sm:$0xff]
  %v19 = vld [vmem:[%s0 + $0x10] sm:$0xff]
  %v20 = vld [vmem:[%s0 + $0x18] sm:$0xff]
  %v21 = vld [vmem:[%s0 + $0x20] sm:$0x1]
  %v22 = vld [vmem:[%s1] sm:$0xff]
  %v23 = vld [vmem:[%s1 + $0x8] sm:$0xff]
  %v24 = vld [vmem:[%s1 + $0x10] sm:$0xff]
  %v25 = vld [vmem:[%s1 + $0x18] sm:$0xff]
  %v26 = vld [vmem:[%s1 + $0x20] sm:$0x1]
  %27 = vxpose.xlu0.b32.start [1/16] %v17, 128
  %28 = vxpose.xlu0.b32.cont [2/16] %v18, 128
  %29 = vxpose.xlu0.b32.cont [3/16] %v19, 128
  %30 = vxpose.xlu0.b32.cont [4/16] %v20, 128
  %31 = vxpose.xlu0.b32.cont [5/16] %v21, 128
  %32 = vxpose.xlu0.b32.cont [6/16] 0.0, 128
  %33 = vxpose.xlu0.b32.cont [7/16] 0.0, 128
  %34 = vxpose.xlu0.b32.cont [8/16] 0.0, 128
  %35 = vxpose.xlu0.b32.cont [9/16] 0.0, 128
  %36 = vxpose.xlu0.b32.cont [10/16] 0.0, 128
  %37 = vxpose.xlu0.b32.cont [11/16] 0.0, 128
  %38 = vxpose.xlu0.b32.cont [12/16] 0.0, 128
  %39 = vxpose.xlu0.b32.cont [13/16] 0.0, 128
  %40 = vxpose.xlu0.b32.cont [14/16] 0.0, 128
  %41 = vxpose.xlu0.b32.cont [15/16] 0.0, 128
  %42 = vxpose.xlu0.b32.end [16/16] 0.0, 128
  %v43 = vpop.trf.xlu0
  %v44 = vpop.trf.xlu0
  %v45 = vpop.trf.xlu0
  %v46 = vpop.trf.xlu0
  %v47 = vpop.trf.xlu0
  %v48 = vpop.trf.xlu0
  %v49 = vpop.trf.xlu0
  %v50 = vpop.trf.xlu0
  %v51 = vpop.trf.xlu0
  %v52 = vpop.trf.xlu0
  %v53 = vpop.trf.xlu0
  %v54 = vpop.trf.xlu0
  %v55 = vpop.trf.xlu0
  %v56 = vpop.trf.xlu0
  %v57 = vpop.trf.xlu0
  %v58 = vpop.trf.xlu0
  %vm59 = vcmask 269312
  %v61 = vsel %vm59, %v43, 0
  %v64 = vsel %vm59, %v44, 0
  %v67 = vsel %vm59, %v45, 0
  %v70 = vsel %vm59, %v46, 0
  %v73 = vsel %vm59, %v47, 0
  %v76 = vsel %vm59, %v48, 0
  %v79 = vsel %vm59, %v49, 0
  %v82 = vsel %vm59, %v50, 0
  %v85 = vsel %vm59, %v51, 0
  %v88 = vsel %vm59, %v52, 0
  %v91 = vsel %vm59, %v53, 0
  %v94 = vsel %vm59, %v54, 0
  %v97 = vsel %vm59, %v55, 0
  %v100 = vsel %vm59, %v56, 0
  %v103 = vsel %vm59, %v57, 0
  %v106 = vsel %vm59, %v58, 0
  %vm108 = vcmask 1040384
  %v110 = vsel %vm108, %v26, 0
  %112 = vmatprep.subr.mxu0 0.0
  %113 = vmatpush1.msra.mxu0 %v22
  %114 = vmatprep.subr.mxu0 0.0
  %115 = vmatpush1.msra.mxu0 %v23
  %116 = vmatprep.subr.mxu0 0.0
  %117 = vmatpush1.msra.mxu0 %v24
  %118 = vmatprep.subr.mxu0 0.0
  %119 = vmatpush1.msra.mxu0 %v25
  %120 = vmatprep.subr.mxu0 0.0
  %121 = vmatpush1.msra.mxu0 %v110
  %122 = vmatprep.subr.mxu0 0.0
  %123 = vmatpush1.msra.mxu0 0.0
  %124 = vmatprep.subr.mxu0 0.0
  %125 = vmatpush1.msra.mxu0 0.0
  %126 = vmatprep.subr.mxu0 0.0
  %127 = vmatpush1.msra.mxu0 0.0
  %128 = vmatprep.subr.mxu0 0.0
  %129 = vmatpush1.msra.mxu0 0.0
  %130 = vmatprep.subr.mxu0 0.0
  %131 = vmatpush1.msra.mxu0 0.0
  %132 = vmatprep.subr.mxu0 0.0
  %133 = vmatpush1.msra.mxu0 0.0
  %134 = vmatprep.subr.mxu0 0.0
  %135 = vmatpush1.msra.mxu0 0.0
  %136 = vmatprep.subr.mxu0 0.0
  %137 = vmatpush1.msra.mxu0 0.0
  %138 = vmatprep.subr.mxu0 0.0
  %139 = vmatpush1.msra.mxu0 0.0
  %140 = vmatprep.subr.mxu0 0.0
  %141 = vmatpush1.msra.mxu0 0.0
  %142 = vmatprep.subr.mxu0 0.0
  %143 = vmatpush1.msra.mxu0 0.0
  %144 = vmatprep.subr.mxu0 0.0
  %145 = vmatpush1.msra.mxu0 0.0
  %146 = vmatprep.subr.mxu0 0.0
  %147 = vmatpush1.msra.mxu0 0.0
  %148 = vmatprep.subr.mxu0 0.0
  %149 = vmatpush1.msra.mxu0 0.0
  %150 = vmatprep.subr.mxu0 0.0
  %151 = vmatpush1.msra.mxu0 0.0
  %152 = vmatprep.subr.mxu0 0.0
  %153 = vmatpush1.msra.mxu0 0.0
  %154 = vmatprep.subr.mxu0 0.0
  %155 = vmatpush1.msra.mxu0 0.0
  %156 = vmatprep.subr.mxu0 0.0
  %157 = vmatpush1.msra.mxu0 0.0
  %158 = vmatprep.subr.mxu0 0.0
  %159 = vmatpush1.msra.mxu0 0.0
  %160 = vmatprep.subr.mxu0 0.0
  %161 = vmatpush1.msra.mxu0 0.0
  %162 = vmatprep.subr.mxu0 0.0
  %163 = vmatpush1.msra.mxu0 0.0
  %164 = vmatprep.subr.mxu0 0.0
  %165 = vmatpush1.msra.mxu0 0.0
  %166 = vmatprep.subr.mxu0 0.0
  %167 = vmatpush1.msra.mxu0 0.0
  %168 = vmatprep.subr.mxu0 0.0
  %169 = vmatpush1.msra.mxu0 0.0
  %170 = vmatprep.subr.mxu0 0.0
  %171 = vmatpush1.msra.mxu0 0.0
  %172 = vmatprep.subr.mxu0 0.0
  %173 = vmatpush1.msra.mxu0 0.0
  %174 = vmatprep.subr.mxu0 0.0
  %175 = vmatpush1.msra.mxu0 0.0
  %176 = vmatprep.mubr.f32.mxu0 0.0
  %177 = vmatmul.mubr.f32.gmra.mrb[0].mxu0 %v61
  %v178 = vpop.f32.mrb[0].mxu0
  %v179 = vadd.f32 0.0, %v178
  %v180 = vpop.f32.mrb[0].mxu0
  %181 = vmatprep.mubr.f32.mxu0 0.0
  %182 = vmatmul.mubr.f32.gmra.mrb[0].mxu0 %v64
  %v183 = vpop.f32.mrb[0].mxu0
  %v184 = vadd.f32 0.0, %v183
  %v185 = vpop.f32.mrb[0].mxu0
  %186 = vmatprep.mubr.f32.mxu0 0.0
  %187 = vmatmul.mubr.f32.gmra.mrb[0].mxu0 %v67
  %v188 = vpop.f32.mrb[0].mxu0
  %v189 = vadd.f32 0.0, %v188
  %v190 = vpop.f32.mrb[0].mxu0
  %191 = vmatprep.mubr.f32.mxu0 0.0
  %192 = vmatmul.mubr.f32.gmra.mrb[0].mxu0 %v70
  %v193 = vpop.f32.mrb[0].mxu0
  %v194 = vadd.f32 0.0, %v193
  %v195 = vpop.f32.mrb[0].mxu0
  %196 = vmatprep.mubr.f32.mxu0 0.0
  %197 = vmatmul.mubr.f32.gmra.mrb[0].mxu0 %v73
  %v198 = vpop.f32.mrb[0].mxu0
  %v199 = vadd.f32 0.0, %v198
  %v200 = vpop.f32.mrb[0].mxu0
  %201 = vmatprep.mubr.f32.mxu0 0.0
  %202 = vmatmul.mubr.f32.gmra.mrb[0].mxu0 %v76
  %v203 = vpop.f32.mrb[0].mxu0
  %v204 = vadd.f32 0.0, %v203
  %v205 = vpop.f32.mrb[0].mxu0
  %206 = vmatprep.mubr.f32.mxu0 0.0
  %207 = vmatmul.mubr.f32.gmra.mrb[0].mxu0 %v79
  %v208 = vpop.f32.mrb[0].mxu0
  %v209 = vadd.f32 0.0, %v208
  %v210 = vpop.f32.mrb[0].mxu0
  %211 = vmatprep.mubr.f32.mxu0 0.0
  %212 = vmatmul.mubr.f32.gmra.mrb[0].mxu0 %v82
  %v213 = vpop.f32.mrb[0].mxu0
  %v214 = vadd.f32 0.0, %v213
  %v215 = vpop.f32.mrb[0].mxu0
  %216 = vmatprep.mubr.f32.mxu0 0.0
  %217 = vmatmul.mubr.f32.gmra.mrb[0].mxu0 %v85
  %v218 = vpop.f32.mrb[0].mxu0
  %v219 = vadd.f32 0.0, %v218
  %v220 = vpop.f32.mrb[0].mxu0
  %221 = vmatprep.mubr.f32.mxu0 0.0
  %222 = vmatmul.mubr.f32.gmra.mrb[0].mxu0 %v88
  %v223 = vpop.f32.mrb[0].mxu0
  %v224 = vadd.f32 0.0, %v223
  %v225 = vpop.f32.mrb[0].mxu0
  %226 = vmatprep.mubr.f32.mxu0 0.0
  %227 = vmatmul.mubr.f32.gmra.mrb[0].mxu0 %v91
  %v228 = vpop.f32.mrb[0].mxu0
  %v229 = vadd.f32 0.0, %v228
  %v230 = vpop.f32.mrb[0].mxu0
  %231 = vmatprep.mubr.f32.mxu0 0.0
  %232 = vmatmul.mubr.f32.gmra.mrb[0].mxu0 %v94
  %v233 = vpop.f32.mrb[0].mxu0
  %v234 = vadd.f32 0.0, %v233
  %v235 = vpop.f32.mrb[0].mxu0
  %236 = vmatprep.mubr.f32.mxu0 0.0
  %237 = vmatmul.mubr.f32.gmra.mrb[0].mxu0 %v97
  %v238 = vpop.f32.mrb[0].mxu0
  %v239 = vadd.f32 0.0, %v238
  %v240 = vpop.f32.mrb[0].mxu0
  %241 = vmatprep.mubr.f32.mxu0 0.0
  %242 = vmatmul.mubr.f32.gmra.mrb[0].mxu0 %v100
  %v243 = vpop.f32.mrb[0].mxu0
  %v244 = vadd.f32 0.0, %v243
  %v245 = vpop.f32.mrb[0].mxu0
  %246 = vmatprep.mubr.f32.mxu0 0.0
  %247 = vmatmul.mubr.f32.gmra.mrb[0].mxu0 %v103
  %v248 = vpop.f32.mrb[0].mxu0
  %v249 = vadd.f32 0.0, %v248
  %v250 = vpop.f32.mrb[0].mxu0
  %251 = vmatprep.mubr.f32.mxu0 0.0
  %252 = vmatmul.mubr.f32.gmra.mrb[0].mxu0 %v106
  %v253 = vpop.f32.mrb[0].mxu0
  %v254 = vadd.f32 0.0, %v253
  %v255 = vpop.f32.mrb[0].mxu0
  %256 = vdwg.mxu0
  %v257 = vmax.f32 %v179, %v199
  %v258 = vmax.f32 %v184, %v204
  %v259 = vmax.f32 %v189, %v209
  %v260 = vmax.f32 %v194, %v214
  %v261 = vmax.f32 %v257, %v219
  %v262 = vmax.f32 %v258, %v224
  %v263 = vmax.f32 %v259, %v229
  %v264 = vmax.f32 %v260, %v234
  %v265 = vmax.f32 %v261, %v239
  %v266 = vmax.f32 %v262, %v244
  %v267 = vmax.f32 %v263, %v249
  %v268 = vmax.f32 %v264, %v254
  %v269 = vmax.f32 %v265, %v266
  %v270 = vmax.f32 %v267, %v268
  %v271 = vmax.f32 %v269, %v270
  %v272 = vrot.slane %v271, 4
  %v273 = vmax.f32 %v271, %v272
  %v274 = vrot.slane %v273, 2
  %v275 = vmax.f32 %v273, %v274
  %v276 = vrot.slane %v275, 1
  %v277 = vmax.f32 %v275, %v276
  %v278 = vld [vmem:[#allocation2] sm:$0x1]
  %v279 = vmax.f32 %v278, %v277
  %v280 = vld [vmem:[#allocation3] sm:$0x1]
  %v281 = vsub.f32 %v278, %v279
  %v282 = vmul.f32 %v281, 1.442695
  %v283 = vpow.pop %v282
  %v284 = vmul.f32 %v280, %v283
  %v286 = vlaneseq
  %v287 = vshrl.u32 %v286, 7
  %v288 = vsub.s32 0, %v287
  %v289 = vrot.slane %v279, %v288
  %v291 = vsub.f32 %v179, %v289
  %v292 = vsub.f32 %v184, %v289
  %v293 = vsub.f32 %v189, %v289
  %v294 = vsub.f32 %v194, %v289
  %v295 = vsub.f32 %v199, %v289
  %v296 = vsub.f32 %v204, %v289
  %v297 = vsub.f32 %v209, %v289
  %v298 = vsub.f32 %v214, %v289
  %v299 = vsub.f32 %v219, %v289
  %v300 = vsub.f32 %v224, %v289
  %v301 = vsub.f32 %v229, %v289
  %v302 = vsub.f32 %v234, %v289
  %v303 = vsub.f32 %v239, %v289
  %v304 = vsub.f32 %v244, %v289
  %v305 = vsub.f32 %v249, %v289
  %v306 = vsub.f32 %v254, %v289
  %v307 = vmul.f32 %v291, 1.442695
  %v308 = vpow.pop %v307
  %v309 = vmul.f32 %v292, 1.442695
  %v310 = vpow.pop %v309
  %v311 = vmul.f32 %v293, 1.442695
  %v312 = vpow.pop %v311
  %v313 = vmul.f32 %v294, 1.442695
  %v314 = vpow.pop %v313
  %v315 = vmul.f32 %v295, 1.442695
  %v316 = vpow.pop %v315
  %v317 = vmul.f32 %v296, 1.442695
  %v318 = vpow.pop %v317
  %v319 = vmul.f32 %v297, 1.442695
  %v320 = vpow.pop %v319
  %v321 = vmul.f32 %v298, 1.442695
  %v322 = vpow.pop %v321
  %v323 = vmul.f32 %v299, 1.442695
  %v324 = vpow.pop %v323
  %v325 = vmul.f32 %v300, 1.442695
  %v326 = vpow.pop %v325
  %v327 = vmul.f32 %v301, 1.442695
  %v328 = vpow.pop %v327
  %v329 = vmul.f32 %v302, 1.442695
  %v330 = vpow.pop %v329
  %v331 = vmul.f32 %v303, 1.442695
  %v332 = vpow.pop %v331
  %v333 = vmul.f32 %v304, 1.442695
  %v334 = vpow.pop %v333
  %v335 = vmul.f32 %v305, 1.442695
  %v336 = vpow.pop %v335
  %v337 = vmul.f32 %v306, 1.442695
  %v338 = vpow.pop %v337
  %v339 = vadd.f32 %v308, %v310
  %v340 = vadd.f32 %v339, %v312
  %v341 = vadd.f32 %v340, %v314
  %v342 = vadd.f32 %v341, %v316
  %v343 = vadd.f32 %v342, %v318
  %v344 = vadd.f32 %v343, %v320
  %v345 = vadd.f32 %v344, %v322
  %v346 = vadd.f32 %v345, %v324
  %v347 = vadd.f32 %v346, %v326
  %v348 = vadd.f32 %v347, %v328
  %v349 = vadd.f32 %v348, %v330
  %v350 = vadd.f32 %v349, %v332
  %v351 = vadd.f32 %v350, %v334
  %v352 = vadd.f32 %v351, %v336
  %v353 = vadd.f32 %v352, %v338
  %v354 = vrot.slane %v353, 4
  %v355 = vadd.f32 %v353, %v354
  %v356 = vrot.slane %v355, 2
  %v357 = vadd.f32 %v355, %v356
  %v358 = vrot.slane %v357, 1
  %v359 = vadd.f32 %v357, %v358
  %v360 = vadd.f32 %v284, %v359
  %361 = vst [vmem:[#allocation3] sm:$0x1] %v360
  %362 = vst [vmem:[#allocation2] sm:$0x1] %v279
  // Predicated region
  $region14: #{token_logprobs.1} parent=0 // pred_check
    %p363 = pneg %p11
  $region15: #{token_logprobs.1} parent=0 // pred_check_branch
    %365 = sbr.rel (%p363) target = $region17
  $region16: #{token_logprobs.1} parent=0 // pred_region
    %v366 = vld [vmem:[#allocation2] sm:$0x1]
    %v367 = vld [vmem:[#allocation3] sm:$0x1]
    %v368 = vlog2.pop %v367
    %v369 = vmul.f32 %v368, 0.6931472
    %v370 = vadd.f32 %v366, %v369
    %371 = vst [vmem:[%s2] sm:$0x1] %v370
  $region17: #{token_logprobs.1} parent=0 // pred_fallthru
    _
  // Predicated region
  $region18: #{token_logprobs.1} parent=0 // pred_check
    _
  $region19: #{token_logprobs.1} parent=0 // pred_check_branch
    %373 = sbr.rel (0) target = $region21
  $region20: #{token_logprobs.1} parent=0 // pred_region
    _
  $region21: #{token_logprobs.1} parent=0 // pred_fallthru
    _
  // Predicated region
  $region22: #{token_logprobs.1} parent=0 // pred_check
    _
  $region23: #{token_logprobs.1} parent=0 // pred_check_branch
    %375 = sbr.rel (0) target = $region25
  $region24: #{token_logprobs.1} parent=0 // pred_region
    _
  $region25: #{token_logprobs.1} parent=0 // pred_fallthru
    _

</llo_original>
